<compile_context>
chip_gen: v6e
topology: v6e:2x2x1
jax: 0.10.0
libtpu: 0.0.40
codegen_flags: <defaults>
</compile_context>

<pallas_src>
import functools

import jax
import jax.numpy as jnp
from jax import lax
from jax.experimental import pallas as pl
from jax.experimental.pallas import tpu as pltpu

_MIB = 1024 * 1024


# ----------------------------------------------------------------------------- helpers
def _vmem_capacity_bytes():
    try:
        return int(pltpu.get_tpu_info().vmem_capacity_bytes)
    except Exception:
        return 64 * _MIB  # conservative default (v7x per-core VMEM)


def _round_down(x, m):
    return max(m, (x // m) * m)


def _working_bytes_per_elem(itemsize):
    # double-buffered in + out tiles (native dtype) plus the two f32
    # temporaries the kernel materializes (cast copy + scaled result).
    return 4 * itemsize + 8


def _vmem_limit_for(tile_elems, itemsize):
    cap = _vmem_capacity_bytes()
    working = tile_elems * _working_bytes_per_elem(itemsize) + 4 * _MIB
    return int(max(16 * _MIB, min(int(cap * 0.75), working)))


def _scale_from_stat(stat, power):
    """stat = sum(x**p) in f32 -> multiplicative scale 1 / stat**(1/p)."""
    if power == 2:
        return lax.rsqrt(stat)                       # EUP slot, not VALU divide
    norm = jnp.power(stat, 1.0 / float(power))
    return pl.reciprocal(norm)                       # EUP reciprocal, not divide


# ----------------------------------------------------------------------------- kernels
def _rows_kernel(x_ref, o_ref, *, power, native_scale):
    """Lp-normalize each row of a [tr, D] tile (reduce along lanes)."""
    x = x_ref[...]
    xf = x.astype(jnp.float32)
    p = xf * xf if power == 2 else xf ** float(power)
    stat = jnp.sum(p, axis=-1, keepdims=True)        # [tr, 1]
    scale = _scale_from_stat(stat, power)
    if native_scale:
        o_ref[...] = x * scale.astype(x.dtype)
    else:
        o_ref[...] = (xf * scale).astype(o_ref.dtype)


def _channels_kernel(x_ref, o_ref, *, power, native_scale):
    """Lp-normalize along the channel (sublane) axis of a [1, C, ts] tile."""
    x = x_ref[...]
    xf = x.astype(jnp.float32)
    p = xf * xf if power == 2 else xf ** float(power)
    stat = jnp.sum(p, axis=1, keepdims=True)          # [1, 1, ts]  (XLU reduce)
    scale = _scale_from_stat(stat, power)
    if native_scale:
        o_ref[...] = x * scale.astype(x.dtype)
    else:
        o_ref[...] = (xf * scale).astype(o_ref.dtype)


def _rows_partial_stat_kernel(x_ref, stat_ref, *, power, d_total, td):
    """Pass 1 of the wide-D path: accumulate sum(x**p) over D tiles."""
    k = pl.program_id(1)

    @pl.when(k == 0)
    def _():
        stat_ref[...] = jnp.zeros_like(stat_ref)

    x = x_ref[...].astype(jnp.float32)
    if d_total % td != 0:
        # Mask the padded lanes of the partial last D block before reducing.
        col = k * td + lax.broadcasted_iota(jnp.int32, x.shape, 1)
        x = jnp.where(col < d_total, x, 0.0)
    p = x * x if power == 2 else x ** float(power)
    stat_ref[...] += jnp.sum(p, axis=-1, keepdims=True)


def _rows_scale_kernel(x_ref, stat_ref, o_ref, *, power, native_scale):
    """Pass 2 of the wide-D path: scale each [tr, td] tile by 1/norm."""
    scale = _scale_from_stat(stat_ref[...], power)
    x = x_ref[...]
    if native_scale:
        o_ref[...] = x * scale.astype(x.dtype)
    else:
        o_ref[...] = (x.astype(jnp.float32) * scale).astype(o_ref.dtype)


# ----------------------------------------------------------------------------- drivers
def _normalize_rows(x2d, *, power, tile_budget_bytes):
    B, D = x2d.shape
    itemsize = x2d.dtype.itemsize
    native_scale = itemsize < 4
    elem_budget = max(1, tile_budget_bytes // _working_bytes_per_elem(itemsize))

    wide_d = min(8, B) * D > elem_budget
    if not wide_d:
        # ----- single pass: full row in the lane dimension, row-blocked grid.
        if B <= 8:
            tr = B
        else:
            tr = _round_down(min(elem_budget // max(D, 1), B), 8)
            if tr >= B and B >= 16:
                # Keep >= 2 grid steps so v7x's two TensorCores both stream.
                tr = _round_down(pl.cdiv(B, 2), 8)
        grid = (pl.cdiv(B, tr),)
        kernel = functools.partial(_rows_kernel, power=power,
                                   native_scale=native_scale)
        return pl.pallas_call(
            kernel,
            out_shape=jax.ShapeDtypeStruct((B, D), x2d.dtype),
            grid=grid,
            in_specs=[pl.BlockSpec((tr, D), lambda i: (i, 0))],
            out_specs=pl.BlockSpec((tr, D), lambda i: (i, 0)),
            compiler_params=pltpu.CompilerParams(
                dimension_semantics=("parallel",),
                vmem_limit_bytes=_vmem_limit_for(tr * D, itemsize)),
        )(x2d)

    # ----- wide-D two-pass scheme: rows do not fit VMEM, tile the D axis.
    tr = B if B <= 8 else 8
    td = _round_down(min(elem_budget // tr, D), 128)
    vmem_limit = _vmem_limit_for(tr * td, itemsize)

    stat_kernel = functools.partial(_rows_partial_stat_kernel, power=power,
                                    d_total=D, td=td)
    stat = pl.pallas_call(
        stat_kernel,
        out_shape=jax.ShapeDtypeStruct((B, 1), jnp.float32),
        grid=(pl.cdiv(B, tr), pl.cdiv(D, td)),
        in_specs=[pl.BlockSpec((tr, td), lambda i, k: (i, k))],
        out_specs=pl.BlockSpec((tr, 1), lambda i, k: (i, 0)),
        compiler_params=pltpu.CompilerParams(
            dimension_semantics=("parallel", "arbitrary"),
            vmem_limit_bytes=vmem_limit),
    )(x2d)

    scale_kernel = functools.partial(_rows_scale_kernel, power=power,
                                     native_scale=native_scale)
    return pl.pallas_call(
        scale_kernel,
        out_shape=jax.ShapeDtypeStruct((B, D), x2d.dtype),
        grid=(pl.cdiv(B, tr), pl.cdiv(D, td)),
        in_specs=[pl.BlockSpec((tr, td), lambda i, k: (i, k)),
                  pl.BlockSpec((tr, 1), lambda i, k: (i, 0))],
        out_specs=pl.BlockSpec((tr, td), lambda i, k: (i, k)),
        compiler_params=pltpu.CompilerParams(
            dimension_semantics=("parallel", "parallel"),
            vmem_limit_bytes=vmem_limit),
    )(x2d, stat)


def _normalize_channels(x3d, *, power, tile_budget_bytes):
    """Normalize [N, C, S] along C (sublane reduction), S kept lane-dense."""
    N, C, S = x3d.shape
    itemsize = x3d.dtype.itemsize
    native_scale = itemsize < 4
    elem_budget = max(1, tile_budget_bytes // _working_bytes_per_elem(itemsize))

    if S <= 128 or C * 128 > elem_budget:
        ts = S  # full spatial extent per block (always legal)
    else:
        ts = _round_down(min(elem_budget // C, S), 128)
    # TODO(synk): a huge C with tiny spatial extent would need a C-tiled
    # two-pass scheme analogous to the wide-D rows path.

    grid = (N, pl.cdiv(S, ts))
    kernel = functools.partial(_channels_kernel, power=power,
                               native_scale=native_scale)
    return pl.pallas_call(
        kernel,
        out_shape=jax.ShapeDtypeStruct((N, C, S), x3d.dtype),
        grid=grid,
        in_specs=[pl.BlockSpec((1, C, ts), lambda n, s: (n, 0, s))],
        out_specs=pl.BlockSpec((1, C, ts), lambda n, s: (n, 0, s)),
        compiler_params=pltpu.CompilerParams(
            dimension_semantics=("parallel", "parallel"),
            vmem_limit_bytes=_vmem_limit_for(C * ts, itemsize)),
    )(x3d)


def normalize(x, *, power=2, tile_budget_bytes=None):
    """Pallas forward of the PyTorch Normalize module (normalize along dim 1)."""
    if tile_budget_bytes is None:
        cap = _vmem_capacity_bytes()
        # Keep the double-buffered working set well below the per-core VMEM
        # capacity (64 MiB on v7x, 128 MiB on v5e/v6e) -> ~2-8 MiB tiles.
        tile_budget_bytes = min(int(cap * 0.4), 40 * _MIB)
    if x.ndim == 2:
        return _normalize_rows(x, power=power,
                               tile_budget_bytes=tile_budget_bytes)
    if x.ndim >= 3:
        n, c = x.shape[0], x.shape[1]
        x3 = x.reshape(n, c, -1)  # contiguous reshape: no HBM transpose passes
        out = _normalize_channels(x3, power=power,
                                  tile_budget_bytes=tile_budget_bytes)
        return out.reshape(x.shape)
    raise ValueError("normalize expects an input with at least 2 dimensions")


# ----------------------------------------------------------------------------- reference / test
def _reference(x, power=2):
    norm = jnp.power(jnp.sum(jnp.power(x, float(power)), axis=1, keepdims=True),
                     1.0 / float(power))
    return x / norm


if __name__ == "__main__":
    key = jax.random.PRNGKey(0)
    k1, k2, k3 = jax.random.split(key, 3)

    # 2D feature case: [batch, hidden] (the common use of this module).
    x2d = jax.random.normal(k1, (8, 32), dtype=jnp.float32)
    out2d = jax.block_until_ready(normalize(x2d, power=2))
    ref2d = _reference(x2d, power=2)
    assert jnp.allclose(out2d, ref2d, rtol=1e-5, atol=1e-5), "2D mismatch"

    # 4D case: [batch, channels, H, W], normalized over channels (dim 1),
    # handled without any HBM transpose (sublane reduction over C).
    x4d = jax.random.normal(k2, (2, 4, 16, 16), dtype=jnp.float32)
    out4d = jax.block_until_ready(normalize(x4d, power=2))
    ref4d = _reference(x4d, power=2)
    assert jnp.allclose(out4d, ref4d, rtol=1e-5, atol=1e-5), "4D mismatch"

    # Force a tiny budget to exercise the two-pass wide-D path (incl. masking
    # of the partial last D block) at a small shape.
    x_wide = jax.random.normal(k3, (16, 600), dtype=jnp.float32)
    out_wide = jax.block_until_ready(
        normalize(x_wide, power=2, tile_budget_bytes=64 * 1024))
    ref_wide = _reference(x_wide, power=2)
    assert jnp.allclose(out_wide, ref_wide, rtol=1e-5, atol=1e-5), "wide-D mismatch"

    print("KERNEL_OK")
</pallas_src>

<mosaic_0001>
module attributes {stable_mosaic.version = 11 : i64} {
  func.func @_rows_kernel(%arg0: i32, %arg1: memref<8x32xf32, #tpu.memory_space<vmem>>, %arg2: memref<8x32xf32, #tpu.memory_space<vmem>>) attributes {dimension_semantics = [#tpu.dimension_semantics<parallel>], iteration_bounds = array<i64: 1>, scalar_prefetch = 0 : i64, scratch_operands = 0 : i64, tpu.core_type = #tpu.core_type<tc>, window_params = [{transform_indices = @transform_0, window_bounds = array<i64: 8, 32>}, {transform_indices = @transform_1, window_bounds = array<i64: 8, 32>}]} {
    %c0 = arith.constant 0 : index
    %c0_0 = arith.constant 0 : index
    %0 = vector.load %arg1[%c0, %c0_0] : memref<8x32xf32, #tpu.memory_space<vmem>>, vector<8x32xf32>
    %1 = arith.mulf %0, %0 : vector<8x32xf32>
    %cst = arith.constant dense<0.000000e+00> : vector<8xf32>
    %2 = vector.multi_reduction <add>, %1, %cst [1] : vector<8x32xf32> to vector<8xf32>
    %3 = vector.shape_cast %2 : vector<8xf32> to vector<8x1xf32>
    %4 = math.rsqrt %3 : vector<8x1xf32>
    %5 = vector.broadcast %4 : vector<8x1xf32> to vector<8x32xf32>
    %6 = arith.mulf %0, %5 : vector<8x32xf32>
    %c0_1 = arith.constant 0 : index
    %c0_2 = arith.constant 0 : index
    %7 = vector.load %arg2[%c0_1, %c0_2] : memref<8x32xf32, #tpu.memory_space<vmem>>, vector<8x32xf32>
    tpu.vector_store %arg2[%c0_1, %c0_2], %6 {strides = array<i32>} : memref<8x32xf32, #tpu.memory_space<vmem>>, vector<8x32xf32>,
    return
  }
  func.func @transform_0(%arg0: i32) -> (i32, i32) {
    %c0_i32 = arith.constant 0 : i32
    %c0_i32_0 = arith.constant 0 : i32
    return %arg0, %c0_i32 : i32, i32
  }
  func.func @transform_1(%arg0: i32) -> (i32, i32) {
    %c0_i32 = arith.constant 0 : i32
    %c0_i32_0 = arith.constant 0 : i32
    return %arg0, %c0_i32 : i32, i32
  }
}

</mosaic_0001>

<llo_original>
// kernel: tpu_custom_call.1
$region0: #{tpu_custom_call.1}
  #allocation0 [shape = 'u32[]', space=smem, size = 0x4, offset = 0x4, fixed_abs, tag = 'smem constant byte address 0x4 - core index']
  #allocation1 [shape = 'u32[144,128]{1,0:T(1,128)}', space=vmem, size = 0x12000, scoped, tag = 'internal scratch']
  %s0 = inlined_call_operand.hbm [shape: f32[8,32], index: 0, kind: input, shape index: {}]
  %s1 = inlined_call_operand.hbm [shape: f32[8,32], index: 1, kind: output, shape index: {}]
  %s2 = sld [smem:[#allocation0]]
  $region18: #{tpu_custom_call.1} parent=0
    _
  %s4 = ssub.s32 1, %s2
  %s5 = scalar_select 0, %s4, %s2
  $region1: #{tpu_custom_call.1} parent=0
    #allocation2 [shape = 'u8[4096]{0}', space=vmem, size = 0x1000, scoped, tag = 'input window, operand 0, single buffered']
    #allocation3 [shape = 's32[1]{0}', space=sflag, size = 0x4, scoped, tag = 'scoped memory for tpu_custom_call.1']
    #allocation4 [shape = 's32[1]{0}', space=sflag, size = 0x4, scoped, tag = 'scoped memory for tpu_custom_call.1']
    #allocation5 [shape = 'u8[4096]{0}', space=vmem, size = 0x1000, scoped, tag = 'output window, operand 0, single buffered']
    %6 = vsyncpa [#allocation3], 0
    %7 = vsyncpa [#allocation4], 0
    // Predicated region
    $region2: #{tpu_custom_call.1} parent=1 // pred_check
      _
    $region3: #{tpu_custom_call.1} parent=1 // pred_check_branch
      %9 = sbr.rel (0) target = $region5
    $region4: #{tpu_custom_call.1} parent=1 // pred_region
      %s11 = ssub.s32 128, 128
      %12 = vsyncadd [#allocation3], %s11
      %s14 = sshll.u32 [#allocation2], 4
      %s15 = int_to_ptr.vmem [resolvable:$true] %s14
      %17 = dma.hbm_to_vmem [thread:$0]  %s0, 128, %s15, [#allocation3]
    $region5: #{tpu_custom_call.1} parent=1 // pred_fallthru
      _
    // Predicated region
    $region6: #{tpu_custom_call.1} parent=1 // pred_check
      _
    $region7: #{tpu_custom_call.1} parent=1 // pred_check_branch
      %19 = sbr.rel (0) target = $region9
    $region8: #{tpu_custom_call.1} parent=1 // pred_region
      %20 = dma.done [#allocation3], 128
    $region9: #{tpu_custom_call.1} parent=1 // pred_fallthru
      _
    %v21 = vld [vmem:[#allocation2] sm:$0xff]
    %v22 = vmul.f32 %v21, %v21
    %vm23 = vcmask 261120
    %v24 = vsel %vm23, %v22, 0.0
    %25 = vadd.xlane.f32.xlu0 %v24
    %v26 = vpop.xlane.xlu0 %25
    %v27 = vrsqrt.pop %v26
    %v28 = vmul.f32 %v21, %v27
    %29 = vst.msk [vmem:[#allocation5] sm:$0xff] %vm23, %v28
    // Predicated region
    $region10: #{tpu_custom_call.1} parent=1 // pred_check
      _
    $region11: #{tpu_custom_call.1} parent=1 // pred_check_branch
      %31 = sbr.rel (0) target = $region13
    $region12: #{tpu_custom_call.1} parent=1 // pred_region
      %s33 = ssub.s32 128, 128
      %34 = vsyncadd [#allocation4], %s33
      %s36 = sshll.u32 [#allocation5], 4
      %s37 = int_to_ptr.vmem [resolvable:$true] %s36
      %39 = dma.vmem_to_hbm [thread:$0]  %s37, 128, %s1, [#allocation4]
    $region13: #{tpu_custom_call.1} parent=1 // pred_fallthru
      _
    // Predicated region
    $region14: #{tpu_custom_call.1} parent=1 // pred_check
      _
    $region15: #{tpu_custom_call.1} parent=1 // pred_check_branch
      %41 = sbr.rel (0) target = $region17
    $region16: #{tpu_custom_call.1} parent=1 // pred_region
      %42 = dma.done [#allocation4], 128
    $region17: #{tpu_custom_call.1} parent=1 // pred_fallthru
      _
    %43 = vsyncpa [#allocation3], 1
    %44 = vsyncpa [#allocation4], 1

</llo_original>
